<compile_context>
chip_gen: v7x
topology: tpu7x:2x2x1
jax: 0.10.0
libtpu: 0.0.40
codegen_flags: <defaults>
</compile_context>

<pallas_src>
import jax
import jax.numpy as jnp
from jax.experimental import pallas as pl
from jax.experimental.pallas import tpu as pltpu


def _round_up(a, b):
    return ((a + b - 1) // b) * b


def _patch_proj_kernel(p_ref, w_ref, b_ref, o_ref):
    # p_ref: (TM, K) bf16    w_ref: (K, E_pad) bf16
    # b_ref: (1, E_pad) f32  o_ref: (TM, E_pad) out dtype (bf16 by default)
    acc = jnp.dot(p_ref[...], w_ref[...], preferred_element_type=jnp.float32)
    o_ref[...] = (acc + b_ref[...]).astype(o_ref.dtype)


def patch_embed_forward(x, weight, bias, patch_size, *, tm_max=1024,
                        out_dtype=jnp.bfloat16):
    """x: (B, C, H, W) NCHW (PyTorch convention).
    weight: (E, C, ph, pw) Conv2d weight, bias: (E,).
    Returns (B, num_patches, E), matching PatchEmbed.forward (bf16 output by
    default, since the downstream encoder blocks run in bf16)."""
    B, C, H, W = x.shape
    ph, pw = patch_size
    E = weight.shape[0]
    gw, gh = W // ph, H // pw          # conv output grid after permute(0,1,3,2)
    M = B * gw * gh
    K = C * ph * pw

    # --- patchify: cast to bf16 FIRST (halves the relayout copy), then a
    # single transpose that keeps the innermost W sub-axis (kh) unit-stride.
    # Rows ordered (b, iw, ih); patch flattened in (c, kw, kh) order — the
    # matching permutation is applied to the tiny weight below.
    xp = x.reshape(B, C, gh, pw, gw, ph).astype(jnp.bfloat16)  # (b,c,ih,kw,iw,kh)
    xp = jnp.transpose(xp, (0, 4, 2, 1, 3, 5))                 # (b,iw,ih,c,kw,kh)
    patches = xp.reshape(M, K)

    # --- alignment / padding
    ROW_ALIGN = 16                                    # bf16 sublane packing
    LANE = 128
    # NOTE: for embed dims > 128 on v6e/v7x, rounding E_pad (and K) to 256
    # would fully fill the 256x256 MXU; irrelevant for this mem-bound case.
    E_pad = _round_up(E, LANE)                        # lane-dense output

    M_pad = _round_up(M, ROW_ALIGN)
    TM = min(tm_max, M_pad)
    # v7x has 2 TensorCores: prefer >= 2 grid steps so the "parallel" grid
    # axis can actually be sharded (no effect on v5e/v6e).
    if M_pad // TM < 2 and M_pad >= 2 * ROW_ALIGN:
        TM = _round_up((M_pad + 1) // 2, ROW_ALIGN)
    M_pad = _round_up(M_pad, TM)                      # grid-divisible

    if M_pad != M:
        patches = jnp.pad(patches, ((0, M_pad - M), (0, 0)))

    # weight columns reordered to (c, kw, kh) to match the patch layout
    w2 = jnp.transpose(weight, (0, 1, 3, 2)).reshape(E, K).T.astype(jnp.bfloat16)
    b2 = bias.astype(jnp.float32).reshape(1, E)
    if E_pad != E:
        w2 = jnp.pad(w2, ((0, 0), (0, E_pad - E)))
        b2 = jnp.pad(b2, ((0, 0), (0, E_pad - E)))

    grid = (M_pad // TM,)

    out_itemsize = jnp.dtype(out_dtype).itemsize

    # Actual double-buffered VMEM footprint (+2x / 1 MiB headroom), instead of
    # a blanket 48 MiB that would starve v7x's 64 MiB VMEM.
    vmem_need = (2 * TM * K * 2            # patch tiles (bf16, double-buffered)
                 + 2 * K * E_pad * 2       # weight (resident; 2x worst case)
                 + 2 * E_pad * 4           # bias
                 + 2 * TM * E_pad * out_itemsize)
    vmem_limit = int(min(max(2 * vmem_need + (1 << 20), 4 << 20), 64 << 20))

    cost = pl.CostEstimate(
        flops=2 * M_pad * K * E_pad,
        transcendentals=0,
        bytes_accessed=(M_pad * K * 2 + K * E_pad * 2
                        + E_pad * 4 + M_pad * E_pad * out_itemsize),
    )

    out = pl.pallas_call(
        _patch_proj_kernel,
        out_shape=jax.ShapeDtypeStruct((M_pad, E_pad), out_dtype),
        grid=grid,
        in_specs=[
            pl.BlockSpec((TM, K), lambda i: (i, 0)),       # patch rows (tiled)
            pl.BlockSpec((K, E_pad), lambda i: (0, 0)),    # weight (resident)
            pl.BlockSpec((1, E_pad), lambda i: (0, 0)),    # bias   (resident)
        ],
        out_specs=pl.BlockSpec((TM, E_pad), lambda i: (i, 0)),
        compiler_params=pltpu.CompilerParams(
            dimension_semantics=("parallel",),
            vmem_limit_bytes=vmem_limit,
        ),
        cost_estimate=cost,
    )(patches, w2, b2)

    out = out[:M, :E]
    # flatten(2).transpose(1,2): (B, E, gw, gh) -> (B, gw*gh, E); our row order
    # (b, iw, ih) already matches Conv2d's output spatial order after permute.
    return out.reshape(B, gw * gh, E)


def _reference(x, weight, bias, patch_size):
    """Pure-JAX (f32) reference using lax.conv for verification."""
    ph, pw = patch_size
    x_p = jnp.transpose(x, (0, 1, 3, 2))  # (B, C, W, H)
    y = jax.lax.conv_general_dilated(
        x_p.astype(jnp.float32), weight.astype(jnp.float32),
        window_strides=(ph, pw), padding="VALID",
        dimension_numbers=("NCHW", "OIHW", "NCHW"))
    y = y + bias.astype(jnp.float32)[None, :, None, None]
    B, E, gw, gh = y.shape
    return jnp.transpose(y.reshape(B, E, gw * gh), (0, 2, 1))


if __name__ == "__main__":
    # Small shapes consistent with the module's forward:
    # img_size=(16,16), patch_size=(8,8), in_chans=4, embed_dim=32, batch=2.
    B, C, H, W = 2, 4, 16, 16
    ph, pw = 8, 8
    E = 32

    key = jax.random.PRNGKey(0)
    kx, kw_, kb = jax.random.split(key, 3)
    x = jax.random.normal(kx, (B, C, H, W), dtype=jnp.float32)
    weight = jax.random.normal(kw_, (E, C, ph, pw), dtype=jnp.float32) * 0.02
    bias = jax.random.normal(kb, (E,), dtype=jnp.float32) * 0.02

    out = patch_embed_forward(x, weight, bias, (ph, pw))
    out = jax.block_until_ready(out)

    ref = _reference(x, weight, bias, (ph, pw))
    assert out.shape == (B, (W // ph) * (H // pw), E), out.shape
    assert out.dtype == jnp.bfloat16, out.dtype
    # bf16 MXU inputs + bf16 output (f32 accumulate) -> loosened tolerance.
    assert jnp.allclose(out.astype(jnp.float32), ref, atol=2e-2, rtol=2e-2), \
        "mismatch vs reference"

    print("KERNEL_OK")
</pallas_src>

<mosaic_0001>
module attributes {stable_mosaic.version = 11 : i64} {
  func.func @_patch_proj_kernel(%arg0: i32, %arg1: memref<16x256xbf16, #tpu.memory_space<vmem>>, %arg2: memref<256x128xbf16, #tpu.memory_space<vmem>>, %arg3: memref<1x128xf32, #tpu.memory_space<vmem>>, %arg4: memref<16x128xbf16, #tpu.memory_space<vmem>>) attributes {dimension_semantics = [#tpu.dimension_semantics<parallel>], iteration_bounds = array<i64: 1>, scalar_prefetch = 0 : i64, scratch_operands = 0 : i64, tpu.core_type = #tpu.core_type<tc>, window_params = [{transform_indices = @transform_0, window_bounds = array<i64: 16, 256>}, {pipeline_mode = #tpu.pipeline_mode<synchronous>, transform_indices = @transform_1, window_bounds = array<i64: 256, 128>}, {pipeline_mode = #tpu.pipeline_mode<synchronous>, transform_indices = @transform_2, window_bounds = array<i64: 1, 128>}, {transform_indices = @transform_3, window_bounds = array<i64: 16, 128>}]} {
    %c0 = arith.constant 0 : index
    %c0_0 = arith.constant 0 : index
    %0 = vector.load %arg1[%c0, %c0_0] : memref<16x256xbf16, #tpu.memory_space<vmem>>, vector<16x256xbf16>
    %c0_1 = arith.constant 0 : index
    %c0_2 = arith.constant 0 : index
    %1 = vector.load %arg2[%c0_1, %c0_2] : memref<256x128xbf16, #tpu.memory_space<vmem>>, vector<256x128xbf16>
    %cst = arith.constant dense<0.000000e+00> : vector<16x128xf32>
    %2 = tpu.matmul %0, %1, %cst {dimension_numbers = #tpu.dot_dimension_numbers<[1], [0], [0], [1], [0, 0, 1, 1], [], []>} : vector<16x256xbf16>, vector<256x128xbf16>, vector<16x128xf32> -> vector<16x128xf32>
    %c0_3 = arith.constant 0 : index
    %c0_4 = arith.constant 0 : index
    %3 = vector.load %arg3[%c0_3, %c0_4] : memref<1x128xf32, #tpu.memory_space<vmem>>, vector<1x128xf32>
    %4 = vector.broadcast %3 : vector<1x128xf32> to vector<16x128xf32>
    %5 = arith.addf %2, %4 : vector<16x128xf32>
    %6 = arith.truncf %5 : vector<16x128xf32> to vector<16x128xbf16>
    %c0_5 = arith.constant 0 : index
    %c0_6 = arith.constant 0 : index
    %7 = vector.load %arg4[%c0_5, %c0_6] : memref<16x128xbf16, #tpu.memory_space<vmem>>, vector<16x128xbf16>
    tpu.vector_store %arg4[%c0_5, %c0_6], %6 {strides = array<i32>} : memref<16x128xbf16, #tpu.memory_space<vmem>>, vector<16x128xbf16>,
    return
  }
  func.func @transform_0(%arg0: i32) -> (i32, i32) {
    %c0_i32 = arith.constant 0 : i32
    %c0_i32_0 = arith.constant 0 : i32
    return %arg0, %c0_i32 : i32, i32
  }
  func.func @transform_1(%arg0: i32) -> (i32, i32) {
    %c0_i32 = arith.constant 0 : i32
    %c0_i32_0 = arith.constant 0 : i32
    %c0_i32_1 = arith.constant 0 : i32
    return %c0_i32, %c0_i32_0 : i32, i32
  }
  func.func @transform_2(%arg0: i32) -> (i32, i32) {
    %c0_i32 = arith.constant 0 : i32
    %c0_i32_0 = arith.constant 0 : i32
    %c0_i32_1 = arith.constant 0 : i32
    return %c0_i32, %c0_i32_0 : i32, i32
  }
  func.func @transform_3(%arg0: i32) -> (i32, i32) {
    %c0_i32 = arith.constant 0 : i32
    %c0_i32_0 = arith.constant 0 : i32
    return %arg0, %c0_i32 : i32, i32
  }
}

</mosaic_0001>

<llo_original>
// kernel: tpu_custom_call.1
$region0: #{tpu_custom_call.1}
  #allocation0 [shape = 'u32[]', space=smem, size = 0x4, offset = 0x4, fixed_abs, tag = 'smem constant byte address 0x4 - core index']
  #allocation1 [shape = 'u32[144,128]{1,0:T(1,128)}', space=vmem, size = 0x12000, scoped, tag = 'internal scratch']
  %s0 = inlined_call_operand.hbm [shape: bf16[16,256], index: 0, kind: input, shape index: {}]
  %s1 = inlined_call_operand.hbm [shape: bf16[256,128], index: 1, kind: input, shape index: {}]
  %s2 = inlined_call_operand.vmem [shape: f32[1,128], index: 2, kind: input, shape index: {}]
  %s3 = inlined_call_operand.hbm [shape: bf16[16,128], index: 3, kind: output, shape index: {}]
  %s4 = sld [smem:[#allocation0]]
  $region30: #{tpu_custom_call.1} parent=0
    _
  %s6 = ssub.s32 1, %s4
  %s7 = scalar_select 0, %s6, %s4
  $region1: #{tpu_custom_call.1} parent=0
    #allocation2 [shape = 'u8[8192]{0}', space=vmem, size = 0x2000, scoped, tag = 'input window, operand 0, single buffered']
    #allocation3 [shape = 's32[1]{0}', space=sflag, size = 0x4, scoped, tag = 'scoped memory for tpu_custom_call.1']
    #allocation4 [shape = 's32[1]{0}', space=sflag, size = 0x4, scoped, tag = 'scoped memory for tpu_custom_call.1']
    #allocation5 [shape = 'u8[65536]{0}', space=vmem, size = 0x10000, scoped, tag = 'input window, operand 1, single buffered']
    #allocation6 [shape = 's32[1]{0}', space=sflag, size = 0x4, scoped, tag = 'scoped memory for tpu_custom_call.1']
    #allocation7 [shape = 'u8[4096]{0}', space=vmem, size = 0x1000, scoped, tag = 'output window, operand 0, single buffered']
    %8 = vsyncpa [#allocation3], 0
    %9 = vsyncpa [#allocation6], 0
    %10 = vsyncpa [#allocation4], 0
    // Predicated region
    $region2: #{tpu_custom_call.1} parent=1 // pred_check
      _
    $region3: #{tpu_custom_call.1} parent=1 // pred_check_branch
      %12 = sbr.rel (0) target = $region5
    $region4: #{tpu_custom_call.1} parent=1 // pred_region
      %s14 = ssub.s32 256, 256
      %15 = vsyncadd [#allocation3], %s14
      %s16 = sshll.u32 [#allocation2], 4
      %s17 = int_to_ptr.vmem [resolvable:$true] %s16
      %22 = dma.hbm_to_vmem [thread:$0]  %s0, 256, %s17, [#allocation3], 128, 128, 8
    $region5: #{tpu_custom_call.1} parent=1 // pred_fallthru
      _
    // Predicated region
    $region6: #{tpu_custom_call.1} parent=1 // pred_check
      _
    $region7: #{tpu_custom_call.1} parent=1 // pred_check_branch
      %24 = sbr.rel (0) target = $region9
    $region8: #{tpu_custom_call.1} parent=1 // pred_region
      %s26 = ssub.s32 2048, 2048
      %27 = vsyncadd [#allocation6], %s26
      %s28 = sshll.u32 [#allocation5], 4
      %s29 = int_to_ptr.vmem [resolvable:$true] %s28
      %34 = dma.hbm_to_vmem [thread:$0]  %s1, 2048, %s29, [#allocation6], 64, 64, 4
    $region9: #{tpu_custom_call.1} parent=1 // pred_fallthru
      _
    // Predicated region
    $region10: #{tpu_custom_call.1} parent=1 // pred_check
      _
    $region11: #{tpu_custom_call.1} parent=1 // pred_check_branch
      %36 = sbr.rel (0) target = $region13
    $region12: #{tpu_custom_call.1} parent=1 // pred_region
      _
    $region13: #{tpu_custom_call.1} parent=1 // pred_fallthru
      _
    // Predicated region
    $region14: #{tpu_custom_call.1} parent=1 // pred_check
      _
    $region15: #{tpu_custom_call.1} parent=1 // pred_check_branch
      %38 = sbr.rel (0) target = $region17
    $region16: #{tpu_custom_call.1} parent=1 // pred_region
      %39 = dma.done [#allocation3], 256
    $region17: #{tpu_custom_call.1} parent=1 // pred_fallthru
      _
    // Predicated region
    $region18: #{tpu_custom_call.1} parent=1 // pred_check
      _
    $region19: #{tpu_custom_call.1} parent=1 // pred_check_branch
      %41 = sbr.rel (0) target = $region21
    $region20: #{tpu_custom_call.1} parent=1 // pred_region
      %42 = dma.done [#allocation6], 2048
    $region21: #{tpu_custom_call.1} parent=1 // pred_fallthru
      _
    %v44 = vld [vmem:[#allocation2] sm:$0xff]
    %v45 = vld [vmem:[#allocation2 + $0x8] sm:$0xff]
    %v46 = vld [vmem:[#allocation5] sm:$0xf]
    %v47 = vld [vmem:[#allocation5 + $0x4] sm:$0xf]
    %v48 = vld [vmem:[#allocation5 + $0x8] sm:$0xf]
    %v49 = vld [vmem:[#allocation5 + $0xc] sm:$0xf]
    %v50 = vld [vmem:[#allocation5 + $0x10] sm:$0xf]
    %v51 = vld [vmem:[#allocation5 + $0x14] sm:$0xf]
    %v52 = vld [vmem:[#allocation5 + $0x18] sm:$0xf]
    %v53 = vld [vmem:[#allocation5 + $0x1c] sm:$0xf]
    %v54 = vld [vmem:[#allocation5 + $0x20] sm:$0xf]
    %v55 = vld [vmem:[#allocation5 + $0x24] sm:$0xf]
    %v56 = vld [vmem:[#allocation5 + $0x28] sm:$0xf]
    %v57 = vld [vmem:[#allocation5 + $0x2c] sm:$0xf]
    %v58 = vld [vmem:[#allocation5 + $0x30] sm:$0xf]
    %v59 = vld [vmem:[#allocation5 + $0x34] sm:$0xf]
    %v60 = vld [vmem:[#allocation5 + $0x38] sm:$0xf]
    %v61 = vld [vmem:[#allocation5 + $0x3c] sm:$0xf]
    %v62 = vld [vmem:[#allocation5 + $0x40] sm:$0xf]
    %v63 = vld [vmem:[#allocation5 + $0x44] sm:$0xf]
    %v64 = vld [vmem:[#allocation5 + $0x48] sm:$0xf]
    %v65 = vld [vmem:[#allocation5 + $0x4c] sm:$0xf]
    %v66 = vld [vmem:[#allocation5 + $0x50] sm:$0xf]
    %v67 = vld [vmem:[#allocation5 + $0x54] sm:$0xf]
    %v68 = vld [vmem:[#allocation5 + $0x58] sm:$0xf]
    %v69 = vld [vmem:[#allocation5 + $0x5c] sm:$0xf]
    %v70 = vld [vmem:[#allocation5 + $0x60] sm:$0xf]
    %v71 = vld [vmem:[#allocation5 + $0x64] sm:$0xf]
    %v72 = vld [vmem:[#allocation5 + $0x68] sm:$0xf]
    %v73 = vld [vmem:[#allocation5 + $0x6c] sm:$0xf]
    %v74 = vld [vmem:[#allocation5 + $0x70] sm:$0xf]
    %v75 = vld [vmem:[#allocation5 + $0x74] sm:$0xf]
    %v76 = vld [vmem:[#allocation5 + $0x78] sm:$0xf]
    %v77 = vld [vmem:[#allocation5 + $0x7c] sm:$0xf]
    %v78 = vld [vmem:[%s2] sm:$0x1]
    %v80 = vlaneseq
    %v81 = vshrl.u32 %v80, 7
    %v82 = vsub.s32 0, %v81
    %v83 = vrot.slane %v78, %v82
    %v87 = vunpack.c.l.b16 %v44
    %v88 = vunpack.c.h.b16 %v44
    %v89 = vunpack.c.l.b16 %v45
    %v90 = vunpack.c.h.b16 %v45
    %v91 = vpack.c.b16 %v89, %v87
    %v92 = vpack.c.b16 %v90, %v88
    %v127 = vunpack.c.l.b16 %v46
    %v128 = vunpack.c.l.b16 %v47
    %v129 = vunpack.c.l.b16 %v48
    %v130 = vunpack.c.l.b16 %v49
    %v131 = vunpack.c.l.b16 %v50
    %v132 = vunpack.c.l.b16 %v51
    %v133 = vunpack.c.l.b16 %v52
    %v134 = vunpack.c.l.b16 %v53
    %v135 = vunpack.c.l.b16 %v54
    %v136 = vunpack.c.l.b16 %v55
    %v137 = vunpack.c.l.b16 %v56
    %v138 = vunpack.c.l.b16 %v57
    %v139 = vunpack.c.l.b16 %v58
    %v140 = vunpack.c.l.b16 %v59
    %v141 = vunpack.c.l.b16 %v60
    %v142 = vunpack.c.l.b16 %v61
    %v143 = vunpack.c.l.b16 %v62
    %v144 = vunpack.c.l.b16 %v63
    %v145 = vunpack.c.l.b16 %v64
    %v146 = vunpack.c.l.b16 %v65
    %v147 = vunpack.c.l.b16 %v66
    %v148 = vunpack.c.l.b16 %v67
    %v149 = vunpack.c.l.b16 %v68
    %v150 = vunpack.c.l.b16 %v69
    %v151 = vunpack.c.l.b16 %v70
    %v152 = vunpack.c.l.b16 %v71
    %v153 = vunpack.c.l.b16 %v72
    %v154 = vunpack.c.l.b16 %v73
    %v155 = vunpack.c.l.b16 %v74
    %v156 = vunpack.c.l.b16 %v75
    %v157 = vunpack.c.l.b16 %v76
    %v158 = vunpack.c.l.b16 %v77
    %v159 = vpack.c.b16 %v128, %v127
    %v160 = vpack.c.b16 %v130, %v129
    %v161 = vpack.c.b16 %v132, %v131
    %v162 = vpack.c.b16 %v134, %v133
    %v163 = vpack.c.b16 %v136, %v135
    %v164 = vpack.c.b16 %v138, %v137
    %v165 = vpack.c.b16 %v140, %v139
    %v166 = vpack.c.b16 %v142, %v141
    %v167 = vpack.c.b16 %v144, %v143
    %v168 = vpack.c.b16 %v146, %v145
    %v169 = vpack.c.b16 %v148, %v147
    %v170 = vpack.c.b16 %v150, %v149
    %v171 = vpack.c.b16 %v152, %v151
    %v172 = vpack.c.b16 %v154, %v153
    %v173 = vpack.c.b16 %v156, %v155
    %v174 = vpack.c.b16 %v158, %v157
    %191 = vmatprep.subr.bf16.mxu0 0
    %192 = vmatpush1.bf16.msra.mxu0 %v159
    %193 = vmatprep.subr.bf16.mxu0 0
    %194 = vmatpush1.bf16.msra.mxu0 %v160
    %195 = vmatprep.subr.bf16.mxu0 0
    %196 = vmatpush1.bf16.msra.mxu0 %v161
    %197 = vmatprep.subr.bf16.mxu0 0
    %198 = vmatpush1.bf16.msra.mxu0 %v162
    %199 = vmatprep.subr.bf16.mxu0 0
    %200 = vmatpush1.bf16.msra.mxu0 %v163
    %201 = vmatprep.subr.bf16.mxu0 0
    %202 = vmatpush1.bf16.msra.mxu0 %v164
    %203 = vmatprep.subr.bf16.mxu0 0
    %204 = vmatpush1.bf16.msra.mxu0 %v165
    %205 = vmatprep.subr.bf16.mxu0 0
    %206 = vmatpush1.bf16.msra.mxu0 %v166
    %207 = vmatprep.subr.bf16.mxu0 0
    %208 = vmatpush1.bf16.msra.mxu0 %v167
    %209 = vmatprep.subr.bf16.mxu0 0
    %210 = vmatpush1.bf16.msra.mxu0 %v168
    %211 = vmatprep.subr.bf16.mxu0 0
    %212 = vmatpush1.bf16.msra.mxu0 %v169
    %213 = vmatprep.subr.bf16.mxu0 0
    %214 = vmatpush1.bf16.msra.mxu0 %v170
    %215 = vmatprep.subr.bf16.mxu0 0
    %216 = vmatpush1.bf16.msra.mxu0 %v171
    %217 = vmatprep.subr.bf16.mxu0 0
    %218 = vmatpush1.bf16.msra.mxu0 %v172
    %219 = vmatprep.subr.bf16.mxu0 0
    %220 = vmatpush1.bf16.msra.mxu0 %v173
    %221 = vmatprep.subr.bf16.mxu0 0
    %222 = vmatpush1.bf16.msra.mxu0 %v174
    %223 = vmatprep.mubr.bf16.mxu0 %v92
    %224 = vmatmul.mubr.bf16.gmra.mrb[0].mxu0 %v91
    %v225 = vpop.f32.mrb[0].mxu0
    %v226 = vadd.f32 %v83, %v225
    %v227 = vpop.f32.mrb[0].mxu0
    %v228 = vpop.f32.mrb[0].mxu0
    %v229 = vadd.f32 %v83, %v228
    %v230 = vpop.f32.mrb[0].mxu0
    %231 = vdwg.mxu0
    %v232 = vpack.c.bf16 %v229, %v226
    %v234 = vunpack.c.l.b16 %v232
    %v235 = vunpack.c.h.b16 %v232
    %v236 = vpack.c.b16 %v234, %v234
    %v237 = vpack.c.b16 %v235, %v235
    %240 = vst [vmem:[#allocation7] sm:$0xf] %v236
    %241 = vst [vmem:[#allocation7 + $0x4] sm:$0xf] %v237
    // Predicated region
    $region22: #{tpu_custom_call.1} parent=1 // pred_check
      _
    $region23: #{tpu_custom_call.1} parent=1 // pred_check_branch
      %243 = sbr.rel (0) target = $region25
    $region24: #{tpu_custom_call.1} parent=1 // pred_region
      %s245 = ssub.s32 128, 128
      %246 = vsyncadd [#allocation4], %s245
      %s247 = sshll.u32 [#allocation7], 4
      %s248 = int_to_ptr.vmem [resolvable:$true] %s247
      %253 = dma.vmem_to_hbm [thread:$0]  %s248, 128, %s3, [#allocation4], 64, 64, 4
    $region25: #{tpu_custom_call.1} parent=1 // pred_fallthru
      _
    // Predicated region
    $region26: #{tpu_custom_call.1} parent=1 // pred_check
      _
    $region27: #{tpu_custom_call.1} parent=1 // pred_check_branch
      %255 = sbr.rel (0) target = $region29
    $region28: #{tpu_custom_call.1} parent=1 // pred_region
      %256 = dma.done [#allocation4], 128
    $region29: #{tpu_custom_call.1} parent=1 // pred_fallthru
      _
    %257 = vsyncpa [#allocation3], 1
    %258 = vsyncpa [#allocation6], 1
    %259 = vsyncpa [#allocation4], 1

</llo_original>
